<compile_context>
chip_gen: v5e
topology: v5e:2x2
jax: 0.10.0
libtpu: 0.0.40
codegen_flags: <defaults>
</compile_context>

<pallas_src>
import jax
import jax.numpy as jnp
from jax.experimental import pallas as pl
from jax.experimental.pallas import tpu as pltpu


def _pick_batch_block(n, per_batch_block_bytes, vmem_budget_bytes):
    """Largest Nb dividing n such that the (double-buffered) in+out blocks fit
    the VMEM budget, while keeping >= 2 grid steps when n >= 2 (v7x megacore)."""
    nb = max(1, min(n, vmem_budget_bytes // max(per_batch_block_bytes, 1)))
    if n >= 2:
        nb = min(nb, n // 2)
    nb = max(nb, 1)
    while n % nb:          # keep blocks evenly dividing N (no ragged edge block)
        nb -= 1
    return nb


def _make_shortcut_kernel(pad, C, H, W, Nb):
    Ho, Wo = H // 2, W // 2
    L = Ho * Wo

    def kernel(x_ref, o_ref):
        # x_ref: (Nb, C, H, W)      o_ref: (Nb, C + 2*pad, Ho*Wo)
        x = x_ref[...]
        # stride-2 spatial subsample (even rows, even cols; H and W are even),
        # then flatten the spatial dims so the store target is lane-dense.
        xs = x.reshape(Nb, C, Ho, 2, Wo, 2)[:, :, :, 0, :, 0]      # (Nb, C, Ho, Wo)
        slab = xs.reshape(Nb, C, L).astype(o_ref.dtype)            # (Nb, C, L)

        if pad > 0:
            zero_band = jnp.zeros((Nb, pad, L), o_ref.dtype)
            o_ref[:, :pad, :] = zero_band          # low zero-pad band (written once)
            o_ref[:, pad + C:, :] = zero_band      # high zero-pad band (written once)
        o_ref[:, pad:pad + C, :] = slab            # data band (written once)

    return kernel


def lambda_layer_option_a(x, planes, *, vmem_block_budget_bytes=8 * 1024 * 1024):
    """Pallas implementation of LambdaLayer forward (option-A shortcut).

    x: (N, C, H, W) NCHW, H and W even.
    returns: (N, C + 2*(planes//4), H//2, W//2)
    """
    N, C, H, W = x.shape
    assert H % 2 == 0 and W % 2 == 0, "kernel assumes even spatial dims"
    pad = planes // 4
    Ho, Wo = H // 2, W // 2
    C_out = C + 2 * pad
    L = Ho * Wo

    itemsize = jnp.dtype(x.dtype).itemsize
    # double-buffered input block + output block, per batch element
    per_batch_block_bytes = 2 * (C * H * W + C_out * L) * itemsize
    Nb = _pick_batch_block(N, per_batch_block_bytes, vmem_block_budget_bytes)
    grid = (N // Nb,)

    kernel = _make_shortcut_kernel(pad, C, H, W, Nb)

    out_flat = pl.pallas_call(
        kernel,
        out_shape=jax.ShapeDtypeStruct((N, C_out, L), x.dtype),
        grid_spec=pltpu.PrefetchScalarGridSpec(
            num_scalar_prefetch=0,
            grid=grid,
            in_specs=[pl.BlockSpec((Nb, C, H, W), lambda n: (n, 0, 0, 0))],
            out_specs=pl.BlockSpec((Nb, C_out, L), lambda n: (n, 0, 0)),
        ),
        compiler_params=pltpu.CompilerParams(
            dimension_semantics=("parallel",)),
    )(x)

    # free row-major reshape back to NCHW
    return out_flat.reshape(N, C_out, Ho, Wo)


def _reference(x, planes):
    pad = planes // 4
    xs = x[:, :, ::2, ::2]
    return jnp.pad(xs, ((0, 0), (pad, pad), (0, 0), (0, 0)))


if __name__ == "__main__":
    key = jax.random.PRNGKey(0)

    # Primary small-shape check (consistent with the module usage):
    # batch=2, channels=4, spatial=16, planes=8  ->  output (2, 8, 8, 8)
    N, C, H, W = 2, 4, 16, 16
    planes = 8
    x = jax.random.normal(key, (N, C, H, W), dtype=jnp.float32)

    out = lambda_layer_option_a(x, planes)
    out = jax.block_until_ready(out)
    ref = _reference(x, planes)
    assert out.shape == ref.shape, (out.shape, ref.shape)
    assert jnp.allclose(out, ref), "mismatch vs reference (small shape)"

    # Secondary check exercising the batched (Nb > 1) path at a real
    # ResNet-CIFAR transition shape: 16 -> 32 channels, 32x32 -> 16x16.
    key2 = jax.random.PRNGKey(0)
    x2 = jax.random.normal(key2, (8, 16, 32, 32), dtype=jnp.float32)
    out2 = jax.block_until_ready(lambda_layer_option_a(x2, 32))
    ref2 = _reference(x2, 32)
    assert out2.shape == ref2.shape, (out2.shape, ref2.shape)
    assert jnp.allclose(out2, ref2), "mismatch vs reference (batched shape)"

    print("KERNEL_OK")
</pallas_src>

<mosaic_0001>
module attributes {stable_mosaic.version = 11 : i64} {
  func.func @kernel(%arg0: i32, %arg1: memref<1x4x16x16xf32, #tpu.memory_space<vmem>>, %arg2: memref<1x8x64xf32, #tpu.memory_space<vmem>>) attributes {dimension_semantics = [#tpu.dimension_semantics<parallel>], iteration_bounds = array<i64: 2>, scalar_prefetch = 0 : i64, scratch_operands = 0 : i64, tpu.core_type = #tpu.core_type<tc>, window_params = [{transform_indices = @transform_0, window_bounds = array<i64: 1, 4, 16, 16>}, {transform_indices = @transform_1, window_bounds = array<i64: 1, 8, 64>}]} {
    %c0 = arith.constant 0 : index
    %c0_0 = arith.constant 0 : index
    %c0_1 = arith.constant 0 : index
    %c0_2 = arith.constant 0 : index
    %0 = vector.load %arg1[%c0, %c0_0, %c0_1, %c0_2] : memref<1x4x16x16xf32, #tpu.memory_space<vmem>>, vector<1x4x16x16xf32>
    %1 = vector.shape_cast %0 : vector<1x4x16x16xf32> to vector<1x4x8x2x8x2xf32>
    %2 = vector.extract_strided_slice %1 {offsets = [0, 0, 0, 0, 0, 0], sizes = [1, 4, 8, 1, 8, 1], strides = [1, 1, 1, 1, 1, 1]} : vector<1x4x8x2x8x2xf32> to vector<1x4x8x1x8x1xf32>
    %3 = vector.shape_cast %2 : vector<1x4x8x1x8x1xf32> to vector<1x4x8x8xf32>
    %4 = vector.shape_cast %3 : vector<1x4x8x8xf32> to vector<1x4x64xf32>
    %cst = arith.constant 0.000000e+00 : f32
    %5 = vector.broadcast %cst : f32 to vector<1x2x64xf32>
    %c0_3 = arith.constant 0 : index
    %c0_4 = arith.constant 0 : index
    %c0_5 = arith.constant 0 : index
    %6 = vector.load %arg2[%c0_3, %c0_4, %c0_5] : memref<1x8x64xf32, #tpu.memory_space<vmem>>, vector<1x2x64xf32>
    tpu.vector_store %arg2[%c0_3, %c0_4, %c0_5], %5 {strides = array<i32>} : memref<1x8x64xf32, #tpu.memory_space<vmem>>, vector<1x2x64xf32>,
    %c0_6 = arith.constant 0 : index
    %c6 = arith.constant 6 : index
    %c0_7 = arith.constant 0 : index
    %7 = vector.load %arg2[%c0_6, %c6, %c0_7] : memref<1x8x64xf32, #tpu.memory_space<vmem>>, vector<1x2x64xf32>
    tpu.vector_store %arg2[%c0_6, %c6, %c0_7], %5 {strides = array<i32>} : memref<1x8x64xf32, #tpu.memory_space<vmem>>, vector<1x2x64xf32>,
    %c0_8 = arith.constant 0 : index
    %c2 = arith.constant 2 : index
    %c0_9 = arith.constant 0 : index
    %8 = vector.load %arg2[%c0_8, %c2, %c0_9] : memref<1x8x64xf32, #tpu.memory_space<vmem>>, vector<1x4x64xf32>
    tpu.vector_store %arg2[%c0_8, %c2, %c0_9], %4 {strides = array<i32>} : memref<1x8x64xf32, #tpu.memory_space<vmem>>, vector<1x4x64xf32>,
    return
  }
  func.func @transform_0(%arg0: i32) -> (i32, i32, i32, i32) {
    %c0_i32 = arith.constant 0 : i32
    %c0_i32_0 = arith.constant 0 : i32
    %c0_i32_1 = arith.constant 0 : i32
    %c0_i32_2 = arith.constant 0 : i32
    return %arg0, %c0_i32, %c0_i32_0, %c0_i32_1 : i32, i32, i32, i32
  }
  func.func @transform_1(%arg0: i32) -> (i32, i32, i32) {
    %c0_i32 = arith.constant 0 : i32
    %c0_i32_0 = arith.constant 0 : i32
    %c0_i32_1 = arith.constant 0 : i32
    return %arg0, %c0_i32, %c0_i32_0 : i32, i32, i32
  }
}

</mosaic_0001>

<llo_original>
// kernel: tpu_custom_call.1
$region0: #{tpu_custom_call.1}
  #allocation0 [shape = 'u32[]', space=smem, size = 0x4, offset = 0x4, fixed_abs, tag = 'smem constant byte address 0x4 - core index']
  #allocation1 [shape = 'u32[72,128]{1,0:T(1,128)}', space=vmem, size = 0x9000, scoped, tag = 'internal scratch']
  %s0 = inlined_call_operand.hbm [shape: f32[2,4,16,16], index: 0, kind: input, shape index: {}]
  %s1 = inlined_call_operand.hbm [shape: f32[2,8,64], index: 1, kind: output, shape index: {}]
  %s2 = sld [smem:[#allocation0]]
  $region41: #{tpu_custom_call.1} parent=0
    _
  %s4 = ssub.s32 1, %s2
  %s5 = scalar_select 0, %s4, %s2
  $region1: #{tpu_custom_call.1} parent=0
    #allocation2 [shape = 'u8[65536]{0}', space=vmem, size = 0x10000, scoped, tag = 'input window, operand 0']
    #allocation3 [shape = 's32[2]{0}', space=sflag, size = 0x8, scoped, tag = 'scoped memory for tpu_custom_call.1']
    #allocation4 [shape = 's32[2]{0}', space=sflag, size = 0x8, scoped, tag = 'scoped memory for tpu_custom_call.1']
    #allocation5 [shape = 'u8[8192]{0}', space=vmem, size = 0x2000, scoped, tag = 'output window, operand 0']
    %6 = vsyncpa [#allocation3], 0
    %s7 = scalar_lea.sflag [#allocation3], 1
    %8 = vsyncpa %s7, 0
    %9 = vsyncpa [#allocation4], 0
    %s10 = scalar_lea.sflag [#allocation4], 1
    %11 = vsyncpa %s10, 0
    loop: start=0, step=1, limit=4
    $region2: #{tpu_custom_call.1} parent=1 // loop_pre_header
      _
    $region3: #{tpu_custom_call.1} parent=1 // loop_header
      %s13 = sphi 0, %s17
      %p14 = scmp.ge.s32.totalorder %s13, 4
      %s23 = sphi 0, %s25
      %s26 = sphi 0, %s23
      %s27 = sphi 0, %s26
      %s43 = sphi 0, %s27
      %s49 = sphi 0, %s51
      %s52 = sphi 0, %s49
      %s53 = sphi 0, %s52
      %s69 = sphi 0, %s53
    $region4: #{tpu_custom_call.1} parent=1 // loop_header_branch
      %16 = sbr.rel (%p14) target = $region8
    $region5: #{tpu_custom_call.1} parent=1 // loop_body
      %s18 = ssub.s32 %s13, 1
      %s19 = ssub.s32 %s13, 2
      %s20 = sadd.s32 %s13, 1
      %s21 = ssub.s32 %s13, %s20
      %p22 = scmp.eq.s32.totalorder %s21, 0
      %s24 = sadd.s32 %s23, 1
      %s25 = scalar_select %p22, %s23, %s24
      %p28 = pneg %p22
      %p29 = scmp.eq.s32.totalorder %s13, 1
      %p30 = por %p28, %p29
      %p31 = scmp.ne.s32.totalorder %s23, %s26
      %p32 = scmp.eq.s32.totalorder %s13, 0
      %p33 = por %p31, %p32
      %p34 = scmp.ne.s32.totalorder %s23, %s26
      %p35 = scmp.eq.s32.totalorder %s18, 1
      %p36 = por %p34, %p35
      %p37 = scmp.ne.s32.totalorder %s26, %s27
      %p38 = scmp.eq.s32.totalorder %s18, 0
      %p39 = por %p37, %p38
      %p40 = scmp.ne.s32.totalorder %s26, %s27
      %p41 = scmp.eq.s32.totalorder %s19, 1
      %p42 = por %p40, %p41
      %p44 = scmp.ne.s32.totalorder %s27, %s43
      %p45 = scmp.eq.s32.totalorder %s19, 0
      %p46 = por %p44, %p45
      %s47 = ssub.s32 %s13, %s20
      %p48 = scmp.eq.s32.totalorder %s47, 0
      %s50 = sadd.s32 %s49, 1
      %s51 = scalar_select %p48, %s49, %s50
      %p54 = pneg %p48
      %p55 = scmp.eq.s32.totalorder %s13, 1
      %p56 = por %p54, %p55
      %p57 = scmp.ne.s32.totalorder %s49, %s52
      %p58 = scmp.eq.s32.totalorder %s13, 0
      %p59 = por %p57, %p58
      %p60 = scmp.ne.s32.totalorder %s49, %s52
      %p61 = scmp.eq.s32.totalorder %s18, 1
      %p62 = por %p60, %p61
      %p63 = scmp.ne.s32.totalorder %s52, %s53
      %p64 = scmp.eq.s32.totalorder %s18, 0
      %p65 = por %p63, %p64
      %p66 = scmp.ne.s32.totalorder %s52, %s53
      %p67 = scmp.eq.s32.totalorder %s19, 1
      %p68 = por %p66, %p67
      %p70 = scmp.ne.s32.totalorder %s53, %s69
      %p71 = scmp.eq.s32.totalorder %s19, 0
      %p72 = por %p70, %p71
      %p73 = scmp.le.s32.totalorder 1, %s13
      %p74 = scmp.lt.s32.totalorder %s13, 3
      %p75 = pnand %p73, %p74
      %p76 = pneg %p75
      // Predicated region
      $region9: #{tpu_custom_call.1} parent=5 // pred_check
        _
      $region10: #{tpu_custom_call.1} parent=5 // pred_check_branch
        %78 = sbr.rel (%p75) target = $region12
      $region11: #{tpu_custom_call.1} parent=5 // pred_region
        %s79 = ssub.s32 %s13, 1
      $region12: #{tpu_custom_call.1} parent=5 // pred_fallthru
        _
      %p80 = scmp.lt.s32.totalorder %s13, 2
      // Predicated region
      $region13: #{tpu_custom_call.1} parent=5 // pred_check
        %p81 = pneg %p80
      $region14: #{tpu_custom_call.1} parent=5 // pred_check_branch
        %83 = sbr.rel (%p81) target = $region16
      $region15: #{tpu_custom_call.1} parent=5 // pred_region
        // Predicated region
        $region17: #{tpu_custom_call.1} parent=15 // pred_check
          %p84 = pneg %p33
        $region18: #{tpu_custom_call.1} parent=15 // pred_check_branch
          %86 = sbr.rel (%p84) target = $region20
        $region19: #{tpu_custom_call.1} parent=15 // pred_region
          %s87 = sand.u32 %s23, 1
          %s88 = scalar_lea.sflag [#allocation3], %s87
          %s89 = sand.u32 %s23, 1
          %s90 = smul.addr %s89, 64
          %s91 = scalar_lea.vmem [#allocation2], %s90
          %93 = vsyncadd %s88, 0
          %s94 = smul.addr %s13, 8
          %s95 = smul.addr %s94, 8
          %s96 = scalar_lea.hbm %s0, %s95
          %s97 = sshll.u32 %s96, 4
          %s98 = int_to_ptr.hbm [resolvable:$true] %s97
          %s99 = sshll.u32 %s91, 4
          %s100 = int_to_ptr.vmem [resolvable:$true] %s99
          %105 = dma.hbm_to_vmem [thread:$0]  %s98, 1024, %s100, %s88, 128, 128, 8
        $region20: #{tpu_custom_call.1} parent=15 // pred_fallthru
          _
      $region16: #{tpu_custom_call.1} parent=5 // pred_fallthru
        _
      %p106 = scmp.le.s32.totalorder 1, %s13
      %p107 = scmp.lt.s32.totalorder %s13, 3
      %p108 = pnand %p106, %p107
      %p109 = pneg %p108
      // Predicated region
      $region21: #{tpu_custom_call.1} parent=5 // pred_check
        _
      $region22: #{tpu_custom_call.1} parent=5 // pred_check_branch
        %111 = sbr.rel (%p108) target = $region24
      $region23: #{tpu_custom_call.1} parent=5 // pred_region
        %s112 = ssub.s32 %s13, 1
        %s113 = sand.u32 %s26, 1
        %s114 = scalar_lea.sflag [#allocation3], %s113
        %s115 = sand.u32 %s26, 1
        %s116 = smul.addr %s115, 64
        %s117 = scalar_lea.vmem [#allocation2], %s116
        // Predicated region
        $region25: #{tpu_custom_call.1} parent=23 // pred_check
          %p118 = pneg %p39
        $region26: #{tpu_custom_call.1} parent=23 // pred_check_branch
          %120 = sbr.rel (%p118) target = $region28
        $region27: #{tpu_custom_call.1} parent=23 // pred_region
          %122 = dma.done %s114, 1024
        $region28: #{tpu_custom_call.1} parent=23 // pred_fallthru
          _
        %s123 = sand.u32 %s26, 1
        %s124 = scalar_lea.sflag [#allocation3], %s123
        %s125 = sand.u32 %s26, 1
        %s126 = smul.addr %s125, 64
        %s127 = scalar_lea.vmem [#allocation2], %s126
        %p128 = pneg %p39
        %p129 = pneg %p36
        %p130 = pneg %p65
        %p131 = pneg %p62
        %s132 = sand.u32 %s52, 1
        %s133 = scalar_lea.sflag [#allocation4], %s132
        %s134 = sand.u32 %s52, 1
        %s135 = smul.addr %s134, 8
        %s136 = scalar_lea.vmem [#allocation5], %s135
        %v137 = vld [vmem:[%s117] sm:$0xff]
        %v138 = vld [vmem:[%s117 + $0x8] sm:$0xff]
        %v139 = vld [vmem:[%s117 + $0x10] sm:$0xff]
        %v140 = vld [vmem:[%s117 + $0x18] sm:$0xff]
        %v141 = vld [vmem:[%s117 + $0x20] sm:$0xff]
        %v142 = vld [vmem:[%s117 + $0x28] sm:$0xff]
        %v143 = vld [vmem:[%s117 + $0x30] sm:$0xff]
        %v144 = vld [vmem:[%s117 + $0x38] sm:$0xff]
        %153 = vrot.lane.b32.xlu0 %v137, 126
        %v154 = vpop.permute.xlu0 %153
        %155 = vrot.lane.b32.xlu0 %v138, 126
        %v156 = vpop.permute.xlu0 %155
        %157 = vrot.lane.b32.xlu0 %v139, 126
        %v158 = vpop.permute.xlu0 %157
        %159 = vrot.lane.b32.xlu0 %v140, 126
        %v160 = vpop.permute.xlu0 %159
        %161 = vrot.lane.b32.xlu0 %v141, 126
        %v162 = vpop.permute.xlu0 %161
        %163 = vrot.lane.b32.xlu0 %v142, 126
        %v164 = vpop.permute.xlu0 %163
        %165 = vrot.lane.b32.xlu0 %v143, 126
        %v166 = vpop.permute.xlu0 %165
        %167 = vrot.lane.b32.xlu0 %v144, 126
        %v168 = vpop.permute.xlu0 %167
        %177 = vrot.lane.b32.xlu0 %v137, 124
        %v178 = vpop.permute.xlu0 %177
        %179 = vrot.lane.b32.xlu0 %v138, 124
        %v180 = vpop.permute.xlu0 %179
        %181 = vrot.lane.b32.xlu0 %v139, 124
        %v182 = vpop.permute.xlu0 %181
        %183 = vrot.lane.b32.xlu0 %v140, 124
        %v184 = vpop.permute.xlu0 %183
        %185 = vrot.lane.b32.xlu0 %v141, 124
        %v186 = vpop.permute.xlu0 %185
        %187 = vrot.lane.b32.xlu0 %v142, 124
        %v188 = vpop.permute.xlu0 %187
        %189 = vrot.lane.b32.xlu0 %v143, 124
        %v190 = vpop.permute.xlu0 %189
        %191 = vrot.lane.b32.xlu0 %v144, 124
        %v192 = vpop.permute.xlu0 %191
        %201 = vrot.lane.b32.xlu0 %v137, 122
        %v202 = vpop.permute.xlu0 %201
        %203 = vrot.lane.b32.xlu0 %v138, 122
        %v204 = vpop.permute.xlu0 %203
        %205 = vrot.lane.b32.xlu0 %v139, 122
        %v206 = vpop.permute.xlu0 %205
        %207 = vrot.lane.b32.xlu0 %v140, 122
        %v208 = vpop.permute.xlu0 %207
        %209 = vrot.lane.b32.xlu0 %v141, 122
        %v210 = vpop.permute.xlu0 %209
        %211 = vrot.lane.b32.xlu0 %v142, 122
        %v212 = vpop.permute.xlu0 %211
        %213 = vrot.lane.b32.xlu0 %v143, 122
        %v214 = vpop.permute.xlu0 %213
        %215 = vrot.lane.b32.xlu0 %v144, 122
        %v216 = vpop.permute.xlu0 %215
        %225 = vrot.lane.b32.xlu0 %v137, 120
        %v226 = vpop.permute.xlu0 %225
        %227 = vrot.lane.b32.xlu0 %v138, 120
        %v228 = vpop.permute.xlu0 %227
        %229 = vrot.lane.b32.xlu0 %v139, 120
        %v230 = vpop.permute.xlu0 %229
        %231 = vrot.lane.b32.xlu0 %v140, 120
        %v232 = vpop.permute.xlu0 %231
        %233 = vrot.lane.b32.xlu0 %v141, 120
        %v234 = vpop.permute.xlu0 %233
        %235 = vrot.lane.b32.xlu0 %v142, 120
        %v236 = vpop.permute.xlu0 %235
        %237 = vrot.lane.b32.xlu0 %v143, 120
        %v238 = vpop.permute.xlu0 %237
        %239 = vrot.lane.b32.xlu0 %v144, 120
        %v240 = vpop.permute.xlu0 %239
        %249 = vrot.lane.b32.xlu0 %v137, 118
        %v250 = vpop.permute.xlu0 %249
        %251 = vrot.lane.b32.xlu0 %v138, 118
        %v252 = vpop.permute.xlu0 %251
        %253 = vrot.lane.b32.xlu0 %v139, 118
        %v254 = vpop.permute.xlu0 %253
        %255 = vrot.lane.b32.xlu0 %v140, 118
        %v256 = vpop.permute.xlu0 %255
        %257 = vrot.lane.b32.xlu0 %v141, 118
        %v258 = vpop.permute.xlu0 %257
        %259 = vrot.lane.b32.xlu0 %v142, 118
        %v260 = vpop.permute.xlu0 %259
        %261 = vrot.lane.b32.xlu0 %v143, 118
        %v262 = vpop.permute.xlu0 %261
        %263 = vrot.lane.b32.xlu0 %v144, 118
        %v264 = vpop.permute.xlu0 %263
        %273 = vrot.lane.b32.xlu0 %v137, 116
        %v274 = vpop.permute.xlu0 %273
        %275 = vrot.lane.b32.xlu0 %v138, 116
        %v276 = vpop.permute.xlu0 %275
        %277 = vrot.lane.b32.xlu0 %v139, 116
        %v278 = vpop.permute.xlu0 %277
        %279 = vrot.lane.b32.xlu0 %v140, 116
        %v280 = vpop.permute.xlu0 %279
        %281 = vrot.lane.b32.xlu0 %v141, 116
        %v282 = vpop.permute.xlu0 %281
        %283 = vrot.lane.b32.xlu0 %v142, 116
        %v284 = vpop.permute.xlu0 %283
        %285 = vrot.lane.b32.xlu0 %v143, 116
        %v286 = vpop.permute.xlu0 %285
        %287 = vrot.lane.b32.xlu0 %v144, 116
        %v288 = vpop.permute.xlu0 %287
        %297 = vrot.lane.b32.xlu0 %v137, 114
        %v298 = vpop.permute.xlu0 %297
        %299 = vrot.lane.b32.xlu0 %v138, 114
        %v300 = vpop.permute.xlu0 %299
        %301 = vrot.lane.b32.xlu0 %v139, 114
        %v302 = vpop.permute.xlu0 %301
        %303 = vrot.lane.b32.xlu0 %v140, 114
        %v304 = vpop.permute.xlu0 %303
        %305 = vrot.lane.b32.xlu0 %v141, 114
        %v306 = vpop.permute.xlu0 %305
        %307 = vrot.lane.b32.xlu0 %v142, 114
        %v308 = vpop.permute.xlu0 %307
        %309 = vrot.lane.b32.xlu0 %v143, 114
        %v310 = vpop.permute.xlu0 %309
        %311 = vrot.lane.b32.xlu0 %v144, 114
        %v312 = vpop.permute.xlu0 %311
        %v321 = vrot.slane %v178, 4
        %vm322 = vcmask 1047556
        %v323 = vsel %vm322, %v321, %v137
        %v324 = vrot.slane %v137, 4
        %v325 = vsel %vm322, %v178, %v324
        %v327 = vunpack.c.l.s4 1983009808
        %v328 = vunpack.c.0.s8 %v327
        %v329 = vperm.slane %v323, %v328
        %v331 = vunpack.c.l.s4 1983009808
        %v332 = vunpack.c.0.s8 %v331
        %v333 = vperm.slane %v325, %v332
        %v334 = vrot.slane %v202, 4
        %v335 = vsel %vm322, %v334, %v154
        %v336 = vrot.slane %v154, 4
        %v337 = vsel %vm322, %v202, %v336
        %v339 = vunpack.c.l.s4 1983009808
        %v340 = vunpack.c.0.s8 %v339
        %v341 = vperm.slane %v335, %v340
        %v343 = vunpack.c.l.s4 1983009808
        %v344 = vunpack.c.0.s8 %v343
        %v345 = vperm.slane %v337, %v344
        %v346 = vrot.slane %v274, 4
        %v347 = vsel %vm322, %v346, %v226
        %v348 = vrot.slane %v226, 4
        %v349 = vsel %vm322, %v274, %v348
        %v351 = vunpack.c.l.s4 1983009808
        %v352 = vunpack.c.0.s8 %v351
        %v353 = vperm.slane %v347, %v352
        %v355 = vunpack.c.l.s4 1983009808
        %v356 = vunpack.c.0.s8 %v355
        %v357 = vperm.slane %v349, %v356
        %v358 = vrot.slane %v298, 4
        %v359 = vsel %vm322, %v358, %v250
        %v360 = vrot.slane %v250, 4
        %v361 = vsel %vm322, %v298, %v360
        %v363 = vunpack.c.l.s4 1983009808
        %v364 = vunpack.c.0.s8 %v363
        %v365 = vperm.slane %v359, %v364
        %v367 = vunpack.c.l.s4 1983009808
        %v368 = vunpack.c.0.s8 %v367
        %v369 = vperm.slane %v361, %v368
        %v370 = vrot.slane %v341, 4
        %v371 = vsel %vm322, %v370, %v329
        %v372 = vrot.slane %v329, 4
        %v373 = vsel %vm322, %v341, %v372
        %v375 = vunpack.c.l.s4 1934713408
        %v376 = vunpack.c.0.s8 %v375
        %v377 = vperm.slane %v371, %v376
        %v379 = vunpack.c.l.s4 1934713408
        %v380 = vunpack.c.0.s8 %v379
        %v381 = vperm.slane %v373, %v380
        %v382 = vrot.slane %v345, 4
        %v383 = vsel %vm322, %v382, %v333
        %v384 = vrot.slane %v333, 4
        %v385 = vsel %vm322, %v345, %v384
        %v387 = vunpack.c.l.s4 1934713408
        %v388 = vunpack.c.0.s8 %v387
        %v389 = vperm.slane %v383, %v388
        %v391 = vunpack.c.l.s4 1934713408
        %v392 = vunpack.c.0.s8 %v391
        %v393 = vperm.slane %v385, %v392
        %v394 = vrot.slane %v365, 4
        %v395 = vsel %vm322, %v394, %v353
        %v396 = vrot.slane %v353, 4
        %v397 = vsel %vm322, %v365, %v396
        %v399 = vunpack.c.l.s4 1934713408
        %v400 = vunpack.c.0.s8 %v399
        %v401 = vperm.slane %v395, %v400
        %v403 = vunpack.c.l.s4 1934713408
        %v404 = vunpack.c.0.s8 %v403
        %v405 = vperm.slane %v397, %v404
        %v406 = vrot.slane %v369, 4
        %v407 = vsel %vm322, %v406, %v357
        %v408 = vrot.slane %v357, 4
        %v409 = vsel %vm322, %v369, %v408
        %v411 = vunpack.c.l.s4 1934713408
        %v412 = vunpack.c.0.s8 %v411
        %v413 = vperm.slane %v407, %v412
        %v415 = vunpack.c.l.s4 1934713408
        %v416 = vunpack.c.0.s8 %v415
        %v417 = vperm.slane %v409, %v416
        %v418 = vrot.slane %v401, 4
        %v419 = vsel %vm322, %v418, %v377
        %v420 = vrot.slane %v405, 4
        %v421 = vsel %vm322, %v420, %v381
        %v422 = vrot.slane %v413, 4
        %v423 = vsel %vm322, %v422, %v389
        %v424 = vrot.slane %v417, 4
        %v425 = vsel %vm322, %v424, %v393
        %v426 = vrot.slane %v180, 4
        %v427 = vsel %vm322, %v426, %v138
        %v428 = vrot.slane %v138, 4
        %v429 = vsel %vm322, %v180, %v428
        %v431 = vunpack.c.l.s4 1983009808
        %v432 = vunpack.c.0.s8 %v431
        %v433 = vperm.slane %v427, %v432
        %v435 = vunpack.c.l.s4 1983009808
        %v436 = vunpack.c.0.s8 %v435
        %v437 = vperm.slane %v429, %v436
        %v438 = vrot.slane %v204, 4
        %v439 = vsel %vm322, %v438, %v156
        %v440 = vrot.slane %v156, 4
        %v441 = vsel %vm322, %v204, %v440
        %v443 = vunpack.c.l.s4 1983009808
        %v444 = vunpack.c.0.s8 %v443
        %v445 = vperm.slane %v439, %v444
        %v447 = vunpack.c.l.s4 1983009808
        %v448 = vunpack.c.0.s8 %v447
        %v449 = vperm.slane %v441, %v448
        %v450 = vrot.slane %v276, 4
        %v451 = vsel %vm322, %v450, %v228
        %v452 = vrot.slane %v228, 4
        %v453 = vsel %vm322, %v276, %v452
        %v455 = vunpack.c.l.s4 1983009808
        %v456 = vunpack.c.0.s8 %v455
        %v457 = vperm.slane %v451, %v456
        %v459 = vunpack.c.l.s4 1983009808
        %v460 = vunpack.c.0.s8 %v459
        %v461 = vperm.slane %v453, %v460
        %v462 = vrot.slane %v300, 4
        %v463 = vsel %vm322, %v462, %v252
        %v464 = vrot.slane %v252, 4
        %v465 = vsel %vm322, %v300, %v464
        %v467 = vunpack.c.l.s4 1983009808
        %v468 = vunpack.c.0.s8 %v467
        %v469 = vperm.slane %v463, %v468
        %v471 = vunpack.c.l.s4 1983009808
        %v472 = vunpack.c.0.s8 %v471
        %v473 = vperm.slane %v465, %v472
        %v474 = vrot.slane %v445, 4
        %v475 = vsel %vm322, %v474, %v433
        %v476 = vrot.slane %v433, 4
        %v477 = vsel %vm322, %v445, %v476
        %v479 = vunpack.c.l.s4 1934713408
        %v480 = vunpack.c.0.s8 %v479
        %v481 = vperm.slane %v475, %v480
        %v483 = vunpack.c.l.s4 1934713408
        %v484 = vunpack.c.0.s8 %v483
        %v485 = vperm.slane %v477, %v484
        %v486 = vrot.slane %v449, 4
        %v487 = vsel %vm322, %v486, %v437
        %v488 = vrot.slane %v437, 4
        %v489 = vsel %vm322, %v449, %v488
        %v491 = vunpack.c.l.s4 1934713408
        %v492 = vunpack.c.0.s8 %v491
        %v493 = vperm.slane %v487, %v492
        %v495 = vunpack.c.l.s4 1934713408
        %v496 = vunpack.c.0.s8 %v495
        %v497 = vperm.slane %v489, %v496
        %v498 = vrot.slane %v469, 4
        %v499 = vsel %vm322, %v498, %v457
        %v500 = vrot.slane %v457, 4
        %v501 = vsel %vm322, %v469, %v500
        %v503 = vunpack.c.l.s4 1934713408
        %v504 = vunpack.c.0.s8 %v503
        %v505 = vperm.slane %v499, %v504
        %v507 = vunpack.c.l.s4 1934713408
        %v508 = vunpack.c.0.s8 %v507
        %v509 = vperm.slane %v501, %v508
        %v510 = vrot.slane %v473, 4
        %v511 = vsel %vm322, %v510, %v461
        %v512 = vrot.slane %v461, 4
        %v513 = vsel %vm322, %v473, %v512
        %v515 = vunpack.c.l.s4 1934713408
        %v516 = vunpack.c.0.s8 %v515
        %v517 = vperm.slane %v511, %v516
        %v519 = vunpack.c.l.s4 1934713408
        %v520 = vunpack.c.0.s8 %v519
        %v521 = vperm.slane %v513, %v520
        %v522 = vrot.slane %v505, 4
        %v523 = vsel %vm322, %v522, %v481
        %v524 = vrot.slane %v509, 4
        %v525 = vsel %vm322, %v524, %v485
        %v526 = vrot.slane %v517, 4
        %v527 = vsel %vm322, %v526, %v493
        %v528 = vrot.slane %v521, 4
        %v529 = vsel %vm322, %v528, %v497
        %v530 = vrot.slane %v182, 4
        %v531 = vsel %vm322, %v530, %v139
        %v532 = vrot.slane %v139, 4
        %v533 = vsel %vm322, %v182, %v532
        %v535 = vunpack.c.l.s4 1983009808
        %v536 = vunpack.c.0.s8 %v535
        %v537 = vperm.slane %v531, %v536
        %v539 = vunpack.c.l.s4 1983009808
        %v540 = vunpack.c.0.s8 %v539
        %v541 = vperm.slane %v533, %v540
        %v542 = vrot.slane %v206, 4
        %v543 = vsel %vm322, %v542, %v158
        %v544 = vrot.slane %v158, 4
        %v545 = vsel %vm322, %v206, %v544
        %v547 = vunpack.c.l.s4 1983009808
        %v548 = vunpack.c.0.s8 %v547
        %v549 = vperm.slane %v543, %v548
        %v551 = vunpack.c.l.s4 1983009808
        %v552 = vunpack.c.0.s8 %v551
        %v553 = vperm.slane %v545, %v552
        %v554 = vrot.slane %v278, 4
        %v555 = vsel %vm322, %v554, %v230
        %v556 = vrot.slane %v230, 4
        %v557 = vsel %vm322, %v278, %v556
        %v559 = vunpack.c.l.s4 1983009808
        %v560 = vunpack.c.0.s8 %v559
        %v561 = vperm.slane %v555, %v560
        %v563 = vunpack.c.l.s4 1983009808
        %v564 = vunpack.c.0.s8 %v563
        %v565 = vperm.slane %v557, %v564
        %v566 = vrot.slane %v302, 4
        %v567 = vsel %vm322, %v566, %v254
        %v568 = vrot.slane %v254, 4
        %v569 = vsel %vm322, %v302, %v568
        %v571 = vunpack.c.l.s4 1983009808
        %v572 = vunpack.c.0.s8 %v571
        %v573 = vperm.slane %v567, %v572
        %v575 = vunpack.c.l.s4 1983009808
        %v576 = vunpack.c.0.s8 %v575
        %v577 = vperm.slane %v569, %v576
        %v578 = vrot.slane %v549, 4
        %v579 = vsel %vm322, %v578, %v537
        %v580 = vrot.slane %v537, 4
        %v581 = vsel %vm322, %v549, %v580
        %v583 = vunpack.c.l.s4 1934713408
        %v584 = vunpack.c.0.s8 %v583
        %v585 = vperm.slane %v579, %v584
        %v587 = vunpack.c.l.s4 1934713408
        %v588 = vunpack.c.0.s8 %v587
        %v589 = vperm.slane %v581, %v588
        %v590 = vrot.slane %v553, 4
        %v591 = vsel %vm322, %v590, %v541
        %v592 = vrot.slane %v541, 4
        %v593 = vsel %vm322, %v553, %v592
        %v595 = vunpack.c.l.s4 1934713408
        %v596 = vunpack.c.0.s8 %v595
        %v597 = vperm.slane %v591, %v596
        %v599 = vunpack.c.l.s4 1934713408
        %v600 = vunpack.c.0.s8 %v599
        %v601 = vperm.slane %v593, %v600
        %v602 = vrot.slane %v573, 4
        %v603 = vsel %vm322, %v602, %v561
        %v604 = vrot.slane %v561, 4
        %v605 = vsel %vm322, %v573, %v604
        %v607 = vunpack.c.l.s4 1934713408
        %v608 = vunpack.c.0.s8 %v607
        %v609 = vperm.slane %v603, %v608
        %v611 = vunpack.c.l.s4 1934713408
        %v612 = vunpack.c.0.s8 %v611
        %v613 = vperm.slane %v605, %v612
        %v614 = vrot.slane %v577, 4
        %v615 = vsel %vm322, %v614, %v565
        %v616 = vrot.slane %v565, 4
        %v617 = vsel %vm322, %v577, %v616
        %v619 = vunpack.c.l.s4 1934713408
        %v620 = vunpack.c.0.s8 %v619
        %v621 = vperm.slane %v615, %v620
        %v623 = vunpack.c.l.s4 1934713408
        %v624 = vunpack.c.0.s8 %v623
        %v625 = vperm.slane %v617, %v624
        %v626 = vrot.slane %v609, 4
        %v627 = vsel %vm322, %v626, %v585
        %v628 = vrot.slane %v613, 4
        %v629 = vsel %vm322, %v628, %v589
        %v630 = vrot.slane %v621, 4
        %v631 = vsel %vm322, %v630, %v597
        %v632 = vrot.slane %v625, 4
        %v633 = vsel %vm322, %v632, %v601
        %v634 = vrot.slane %v184, 4
        %v635 = vsel %vm322, %v634, %v140
        %v636 = vrot.slane %v140, 4
        %v637 = vsel %vm322, %v184, %v636
        %v639 = vunpack.c.l.s4 1983009808
        %v640 = vunpack.c.0.s8 %v639
        %v641 = vperm.slane %v635, %v640
        %v643 = vunpack.c.l.s4 1983009808
        %v644 = vunpack.c.0.s8 %v643
        %v645 = vperm.slane %v637, %v644
        %v646 = vrot.slane %v208, 4
        %v647 = vsel %vm322, %v646, %v160
        %v648 = vrot.slane %v160, 4
        %v649 = vsel %vm322, %v208, %v648
        %v651 = vunpack.c.l.s4 1983009808
        %v652 = vunpack.c.0.s8 %v651
        %v653 = vperm.slane %v647, %v652
        %v655 = vunpack.c.l.s4 1983009808
        %v656 = vunpack.c.0.s8 %v655
        %v657 = vperm.slane %v649, %v656
        %v658 = vrot.slane %v280, 4
        %v659 = vsel %vm322, %v658, %v232
        %v660 = vrot.slane %v232, 4
        %v661 = vsel %vm322, %v280, %v660
        %v663 = vunpack.c.l.s4 1983009808
        %v664 = vunpack.c.0.s8 %v663
        %v665 = vperm.slane %v659, %v664
        %v667 = vunpack.c.l.s4 1983009808
        %v668 = vunpack.c.0.s8 %v667
        %v669 = vperm.slane %v661, %v668
        %v670 = vrot.slane %v304, 4
        %v671 = vsel %vm322, %v670, %v256
        %v672 = vrot.slane %v256, 4
        %v673 = vsel %vm322, %v304, %v672
        %v675 = vunpack.c.l.s4 1983009808
        %v676 = vunpack.c.0.s8 %v675
        %v677 = vperm.slane %v671, %v676
        %v679 = vunpack.c.l.s4 1983009808
        %v680 = vunpack.c.0.s8 %v679
        %v681 = vperm.slane %v673, %v680
        %v682 = vrot.slane %v653, 4
        %v683 = vsel %vm322, %v682, %v641
        %v684 = vrot.slane %v641, 4
        %v685 = vsel %vm322, %v653, %v684
        %v687 = vunpack.c.l.s4 1934713408
        %v688 = vunpack.c.0.s8 %v687
        %v689 = vperm.slane %v683, %v688
        %v691 = vunpack.c.l.s4 1934713408
        %v692 = vunpack.c.0.s8 %v691
        %v693 = vperm.slane %v685, %v692
        %v694 = vrot.slane %v657, 4
        %v695 = vsel %vm322, %v694, %v645
        %v696 = vrot.slane %v645, 4
        %v697 = vsel %vm322, %v657, %v696
        %v699 = vunpack.c.l.s4 1934713408
        %v700 = vunpack.c.0.s8 %v699
        %v701 = vperm.slane %v695, %v700
        %v703 = vunpack.c.l.s4 1934713408
        %v704 = vunpack.c.0.s8 %v703
        %v705 = vperm.slane %v697, %v704
        %v706 = vrot.slane %v677, 4
        %v707 = vsel %vm322, %v706, %v665
        %v708 = vrot.slane %v665, 4
        %v709 = vsel %vm322, %v677, %v708
        %v711 = vunpack.c.l.s4 1934713408
        %v712 = vunpack.c.0.s8 %v711
        %v713 = vperm.slane %v707, %v712
        %v715 = vunpack.c.l.s4 1934713408
        %v716 = vunpack.c.0.s8 %v715
        %v717 = vperm.slane %v709, %v716
        %v718 = vrot.slane %v681, 4
        %v719 = vsel %vm322, %v718, %v669
        %v720 = vrot.slane %v669, 4
        %v721 = vsel %vm322, %v681, %v720
        %v723 = vunpack.c.l.s4 1934713408
        %v724 = vunpack.c.0.s8 %v723
        %v725 = vperm.slane %v719, %v724
        %v727 = vunpack.c.l.s4 1934713408
        %v728 = vunpack.c.0.s8 %v727
        %v729 = vperm.slane %v721, %v728
        %v730 = vrot.slane %v713, 4
        %v731 = vsel %vm322, %v730, %v689
        %v732 = vrot.slane %v717, 4
        %v733 = vsel %vm322, %v732, %v693
        %v734 = vrot.slane %v725, 4
        %v735 = vsel %vm322, %v734, %v701
        %v736 = vrot.slane %v729, 4
        %v737 = vsel %vm322, %v736, %v705
        %v738 = vrot.slane %v186, 4
        %v739 = vsel %vm322, %v738, %v141
        %v740 = vrot.slane %v141, 4
        %v741 = vsel %vm322, %v186, %v740
        %v743 = vunpack.c.l.s4 1983009808
        %v744 = vunpack.c.0.s8 %v743
        %v745 = vperm.slane %v739, %v744
        %v747 = vunpack.c.l.s4 1983009808
        %v748 = vunpack.c.0.s8 %v747
        %v749 = vperm.slane %v741, %v748
        %v750 = vrot.slane %v210, 4
        %v751 = vsel %vm322, %v750, %v162
        %v752 = vrot.slane %v162, 4
        %v753 = vsel %vm322, %v210, %v752
        %v755 = vunpack.c.l.s4 1983009808
        %v756 = vunpack.c.0.s8 %v755
        %v757 = vperm.slane %v751, %v756
        %v759 = vunpack.c.l.s4 1983009808
        %v760 = vunpack.c.0.s8 %v759
        %v761 = vperm.slane %v753, %v760
        %v762 = vrot.slane %v282, 4
        %v763 = vsel %vm322, %v762, %v234
        %v764 = vrot.slane %v234, 4
        %v765 = vsel %vm322, %v282, %v764
        %v767 = vunpack.c.l.s4 1983009808
        %v768 = vunpack.c.0.s8 %v767
        %v769 = vperm.slane %v763, %v768
        %v771 = vunpack.c.l.s4 1983009808
        %v772 = vunpack.c.0.s8 %v771
        %v773 = vperm.slane %v765, %v772
        %v774 = vrot.slane %v306, 4
        %v775 = vsel %vm322, %v774, %v258
        %v776 = vrot.slane %v258, 4
        %v777 = vsel %vm322, %v306, %v776
        %v779 = vunpack.c.l.s4 1983009808
        %v780 = vunpack.c.0.s8 %v779
        %v781 = vperm.slane %v775, %v780
        %v783 = vunpack.c.l.s4 1983009808
        %v784 = vunpack.c.0.s8 %v783
        %v785 = vperm.slane %v777, %v784
        %v786 = vrot.slane %v757, 4
        %v787 = vsel %vm322, %v786, %v745
        %v788 = vrot.slane %v745, 4
        %v789 = vsel %vm322, %v757, %v788
        %v791 = vunpack.c.l.s4 1934713408
        %v792 = vunpack.c.0.s8 %v791
        %v793 = vperm.slane %v787, %v792
        %v795 = vunpack.c.l.s4 1934713408
        %v796 = vunpack.c.0.s8 %v795
        %v797 = vperm.slane %v789, %v796
        %v798 = vrot.slane %v761, 4
        %v799 = vsel %vm322, %v798, %v749
        %v800 = vrot.slane %v749, 4
        %v801 = vsel %vm322, %v761, %v800
        %v803 = vunpack.c.l.s4 1934713408
        %v804 = vunpack.c.0.s8 %v803
        %v805 = vperm.slane %v799, %v804
        %v807 = vunpack.c.l.s4 1934713408
        %v808 = vunpack.c.0.s8 %v807
        %v809 = vperm.slane %v801, %v808
        %v810 = vrot.slane %v781, 4
        %v811 = vsel %vm322, %v810, %v769
        %v812 = vrot.slane %v769, 4
        %v813 = vsel %vm322, %v781, %v812
        %v815 = vunpack.c.l.s4 1934713408
        %v816 = vunpack.c.0.s8 %v815
        %v817 = vperm.slane %v811, %v816
        %v819 = vunpack.c.l.s4 1934713408
        %v820 = vunpack.c.0.s8 %v819
        %v821 = vperm.slane %v813, %v820
        %v822 = vrot.slane %v785, 4
        %v823 = vsel %vm322, %v822, %v773
        %v824 = vrot.slane %v773, 4
        %v825 = vsel %vm322, %v785, %v824
        %v827 = vunpack.c.l.s4 1934713408
        %v828 = vunpack.c.0.s8 %v827
        %v829 = vperm.slane %v823, %v828
        %v831 = vunpack.c.l.s4 1934713408
        %v832 = vunpack.c.0.s8 %v831
        %v833 = vperm.slane %v825, %v832
        %v834 = vrot.slane %v817, 4
        %v835 = vsel %vm322, %v834, %v793
        %v836 = vrot.slane %v821, 4
        %v837 = vsel %vm322, %v836, %v797
        %v838 = vrot.slane %v829, 4
        %v839 = vsel %vm322, %v838, %v805
        %v840 = vrot.slane %v833, 4
        %v841 = vsel %vm322, %v840, %v809
        %v842 = vrot.slane %v188, 4
        %v843 = vsel %vm322, %v842, %v142
        %v844 = vrot.slane %v142, 4
        %v845 = vsel %vm322, %v188, %v844
        %v847 = vunpack.c.l.s4 1983009808
        %v848 = vunpack.c.0.s8 %v847
        %v849 = vperm.slane %v843, %v848
        %v851 = vunpack.c.l.s4 1983009808
        %v852 = vunpack.c.0.s8 %v851
        %v853 = vperm.slane %v845, %v852
        %v854 = vrot.slane %v212, 4
        %v855 = vsel %vm322, %v854, %v164
        %v856 = vrot.slane %v164, 4
        %v857 = vsel %vm322, %v212, %v856
        %v859 = vunpack.c.l.s4 1983009808
        %v860 = vunpack.c.0.s8 %v859
        %v861 = vperm.slane %v855, %v860
        %v863 = vunpack.c.l.s4 1983009808
        %v864 = vunpack.c.0.s8 %v863
        %v865 = vperm.slane %v857, %v864
        %v866 = vrot.slane %v284, 4
        %v867 = vsel %vm322, %v866, %v236
        %v868 = vrot.slane %v236, 4
        %v869 = vsel %vm322, %v284, %v868
        %v871 = vunpack.c.l.s4 1983009808
        %v872 = vunpack.c.0.s8 %v871
        %v873 = vperm.slane %v867, %v872
        %v875 = vunpack.c.l.s4 1983009808
        %v876 = vunpack.c.0.s8 %v875
        %v877 = vperm.slane %v869, %v876
        %v878 = vrot.slane %v308, 4
        %v879 = vsel %vm322, %v878, %v260
        %v880 = vrot.slane %v260, 4
        %v881 = vsel %vm322, %v308, %v880
        %v883 = vunpack.c.l.s4 1983009808
        %v884 = vunpack.c.0.s8 %v883
        %v885 = vperm.slane %v879, %v884
        %v887 = vunpack.c.l.s4 1983009808
        %v888 = vunpack.c.0.s8 %v887
        %v889 = vperm.slane %v881, %v888
        %v890 = vrot.slane %v861, 4
        %v891 = vsel %vm322, %v890, %v849
        %v892 = vrot.slane %v849, 4
        %v893 = vsel %vm322, %v861, %v892
        %v895 = vunpack.c.l.s4 1934713408
        %v896 = vunpack.c.0.s8 %v895
        %v897 = vperm.slane %v891, %v896
        %v899 = vunpack.c.l.s4 1934713408
        %v900 = vunpack.c.0.s8 %v899
        %v901 = vperm.slane %v893, %v900
        %v902 = vrot.slane %v865, 4
        %v903 = vsel %vm322, %v902, %v853
        %v904 = vrot.slane %v853, 4
        %v905 = vsel %vm322, %v865, %v904
        %v907 = vunpack.c.l.s4 1934713408
        %v908 = vunpack.c.0.s8 %v907
        %v909 = vperm.slane %v903, %v908
        %v911 = vunpack.c.l.s4 1934713408
        %v912 = vunpack.c.0.s8 %v911
        %v913 = vperm.slane %v905, %v912
        %v914 = vrot.slane %v885, 4
        %v915 = vsel %vm322, %v914, %v873
        %v916 = vrot.slane %v873, 4
        %v917 = vsel %vm322, %v885, %v916
        %v919 = vunpack.c.l.s4 1934713408
        %v920 = vunpack.c.0.s8 %v919
        %v921 = vperm.slane %v915, %v920
        %v923 = vunpack.c.l.s4 1934713408
        %v924 = vunpack.c.0.s8 %v923
        %v925 = vperm.slane %v917, %v924
        %v926 = vrot.slane %v889, 4
        %v927 = vsel %vm322, %v926, %v877
        %v928 = vrot.slane %v877, 4
        %v929 = vsel %vm322, %v889, %v928
        %v931 = vunpack.c.l.s4 1934713408
        %v932 = vunpack.c.0.s8 %v931
        %v933 = vperm.slane %v927, %v932
        %v935 = vunpack.c.l.s4 1934713408
        %v936 = vunpack.c.0.s8 %v935
        %v937 = vperm.slane %v929, %v936
        %v938 = vrot.slane %v921, 4
        %v939 = vsel %vm322, %v938, %v897
        %v940 = vrot.slane %v925, 4
        %v941 = vsel %vm322, %v940, %v901
        %v942 = vrot.slane %v933, 4
        %v943 = vsel %vm322, %v942, %v909
        %v944 = vrot.slane %v937, 4
        %v945 = vsel %vm322, %v944, %v913
        %v946 = vrot.slane %v190, 4
        %v947 = vsel %vm322, %v946, %v143
        %v948 = vrot.slane %v143, 4
        %v949 = vsel %vm322, %v190, %v948
        %v951 = vunpack.c.l.s4 1983009808
        %v952 = vunpack.c.0.s8 %v951
        %v953 = vperm.slane %v947, %v952
        %v955 = vunpack.c.l.s4 1983009808
        %v956 = vunpack.c.0.s8 %v955
        %v957 = vperm.slane %v949, %v956
        %v958 = vrot.slane %v214, 4
        %v959 = vsel %vm322, %v958, %v166
        %v960 = vrot.slane %v166, 4
        %v961 = vsel %vm322, %v214, %v960
        %v963 = vunpack.c.l.s4 1983009808
        %v964 = vunpack.c.0.s8 %v963
        %v965 = vperm.slane %v959, %v964
        %v967 = vunpack.c.l.s4 1983009808
        %v968 = vunpack.c.0.s8 %v967
        %v969 = vperm.slane %v961, %v968
        %v970 = vrot.slane %v286, 4
        %v971 = vsel %vm322, %v970, %v238
        %v972 = vrot.slane %v238, 4
        %v973 = vsel %vm322, %v286, %v972
        %v975 = vunpack.c.l.s4 1983009808
        %v976 = vunpack.c.0.s8 %v975
        %v977 = vperm.slane %v971, %v976
        %v979 = vunpack.c.l.s4 1983009808
        %v980 = vunpack.c.0.s8 %v979
        %v981 = vperm.slane %v973, %v980
        %v982 = vrot.slane %v310, 4
        %v983 = vsel %vm322, %v982, %v262
        %v984 = vrot.slane %v262, 4
        %v985 = vsel %vm322, %v310, %v984
        %v987 = vunpack.c.l.s4 1983009808
        %v988 = vunpack.c.0.s8 %v987
        %v989 = vperm.slane %v983, %v988
        %v991 = vunpack.c.l.s4 1983009808
        %v992 = vunpack.c.0.s8 %v991
        %v993 = vperm.slane %v985, %v992
        %v994 = vrot.slane %v965, 4
        %v995 = vsel %vm322, %v994, %v953
        %v996 = vrot.slane %v953, 4
        %v997 = vsel %vm322, %v965, %v996
        %v999 = vunpack.c.l.s4 1934713408
        %v1000 = vunpack.c.0.s8 %v999
        %v1001 = vperm.slane %v995, %v1000
        %v1003 = vunpack.c.l.s4 1934713408
        %v1004 = vunpack.c.0.s8 %v1003
        %v1005 = vperm.slane %v997, %v1004
        %v1006 = vrot.slane %v969, 4
        %v1007 = vsel %vm322, %v1006, %v957
        %v1008 = vrot.slane %v957, 4
        %v1009 = vsel %vm322, %v969, %v1008
        %v1011 = vunpack.c.l.s4 1934713408
        %v1012 = vunpack.c.0.s8 %v1011
        %v1013 = vperm.slane %v1007, %v1012
        %v1015 = vunpack.c.l.s4 1934713408
        %v1016 = vunpack.c.0.s8 %v1015
        %v1017 = vperm.slane %v1009, %v1016
        %v1018 = vrot.slane %v989, 4
        %v1019 = vsel %vm322, %v1018, %v977
        %v1020 = vrot.slane %v977, 4
        %v1021 = vsel %vm322, %v989, %v1020
        %v1023 = vunpack.c.l.s4 1934713408
        %v1024 = vunpack.c.0.s8 %v1023
        %v1025 = vperm.slane %v1019, %v1024
        %v1027 = vunpack.c.l.s4 1934713408
        %v1028 = vunpack.c.0.s8 %v1027
        %v1029 = vperm.slane %v1021, %v1028
        %v1030 = vrot.slane %v993, 4
        %v1031 = vsel %vm322, %v1030, %v981
        %v1032 = vrot.slane %v981, 4
        %v1033 = vsel %vm322, %v993, %v1032
        %v1035 = vunpack.c.l.s4 1934713408
        %v1036 = vunpack.c.0.s8 %v1035
        %v1037 = vperm.slane %v1031, %v1036
        %v1039 = vunpack.c.l.s4 1934713408
        %v1040 = vunpack.c.0.s8 %v1039
        %v1041 = vperm.slane %v1033, %v1040
        %v1042 = vrot.slane %v1025, 4
        %v1043 = vsel %vm322, %v1042, %v1001
        %v1044 = vrot.slane %v1029, 4
        %v1045 = vsel %vm322, %v1044, %v1005
        %v1046 = vrot.slane %v1037, 4
        %v1047 = vsel %vm322, %v1046, %v1013
        %v1048 = vrot.slane %v1041, 4
        %v1049 = vsel %vm322, %v1048, %v1017
        %v1050 = vrot.slane %v192, 4
        %v1051 = vsel %vm322, %v1050, %v144
        %v1052 = vrot.slane %v144, 4
        %v1053 = vsel %vm322, %v192, %v1052
        %v1055 = vunpack.c.l.s4 1983009808
        %v1056 = vunpack.c.0.s8 %v1055
        %v1057 = vperm.slane %v1051, %v1056
        %v1059 = vunpack.c.l.s4 1983009808
        %v1060 = vunpack.c.0.s8 %v1059
        %v1061 = vperm.slane %v1053, %v1060
        %v1062 = vrot.slane %v216, 4
        %v1063 = vsel %vm322, %v1062, %v168
        %v1064 = vrot.slane %v168, 4
        %v1065 = vsel %vm322, %v216, %v1064
        %v1067 = vunpack.c.l.s4 1983009808
        %v1068 = vunpack.c.0.s8 %v1067
        %v1069 = vperm.slane %v1063, %v1068
        %v1071 = vunpack.c.l.s4 1983009808
        %v1072 = vunpack.c.0.s8 %v1071
        %v1073 = vperm.slane %v1065, %v1072
        %v1074 = vrot.slane %v288, 4
        %v1075 = vsel %vm322, %v1074, %v240
        %v1076 = vrot.slane %v240, 4
        %v1077 = vsel %vm322, %v288, %v1076
        %v1079 = vunpack.c.l.s4 1983009808
        %v1080 = vunpack.c.0.s8 %v1079
        %v1081 = vperm.slane %v1075, %v1080
        %v1083 = vunpack.c.l.s4 1983009808
        %v1084 = vunpack.c.0.s8 %v1083
        %v1085 = vperm.slane %v1077, %v1084
        %v1086 = vrot.slane %v312, 4
        %v1087 = vsel %vm322, %v1086, %v264
        %v1088 = vrot.slane %v264, 4
        %v1089 = vsel %vm322, %v312, %v1088
        %v1091 = vunpack.c.l.s4 1983009808
        %v1092 = vunpack.c.0.s8 %v1091
        %v1093 = vperm.slane %v1087, %v1092
        %v1095 = vunpack.c.l.s4 1983009808
        %v1096 = vunpack.c.0.s8 %v1095
        %v1097 = vperm.slane %v1089, %v1096
        %v1098 = vrot.slane %v1069, 4
        %v1099 = vsel %vm322, %v1098, %v1057
        %v1100 = vrot.slane %v1057, 4
        %v1101 = vsel %vm322, %v1069, %v1100
        %v1103 = vunpack.c.l.s4 1934713408
        %v1104 = vunpack.c.0.s8 %v1103
        %v1105 = vperm.slane %v1099, %v1104
        %v1107 = vunpack.c.l.s4 1934713408
        %v1108 = vunpack.c.0.s8 %v1107
        %v1109 = vperm.slane %v1101, %v1108
        %v1110 = vrot.slane %v1073, 4
        %v1111 = vsel %vm322, %v1110, %v1061
        %v1112 = vrot.slane %v1061, 4
        %v1113 = vsel %vm322, %v1073, %v1112
        %v1115 = vunpack.c.l.s4 1934713408
        %v1116 = vunpack.c.0.s8 %v1115
        %v1117 = vperm.slane %v1111, %v1116
        %v1119 = vunpack.c.l.s4 1934713408
        %v1120 = vunpack.c.0.s8 %v1119
        %v1121 = vperm.slane %v1113, %v1120
        %v1122 = vrot.slane %v1093, 4
        %v1123 = vsel %vm322, %v1122, %v1081
        %v1124 = vrot.slane %v1081, 4
        %v1125 = vsel %vm322, %v1093, %v1124
        %v1127 = vunpack.c.l.s4 1934713408
        %v1128 = vunpack.c.0.s8 %v1127
        %v1129 = vperm.slane %v1123, %v1128
        %v1131 = vunpack.c.l.s4 1934713408
        %v1132 = vunpack.c.0.s8 %v1131
        %v1133 = vperm.slane %v1125, %v1132
        %v1134 = vrot.slane %v1097, 4
        %v1135 = vsel %vm322, %v1134, %v1085
        %v1136 = vrot.slane %v1085, 4
        %v1137 = vsel %vm322, %v1097, %v1136
        %v1139 = vunpack.c.l.s4 1934713408
        %v1140 = vunpack.c.0.s8 %v1139
        %v1141 = vperm.slane %v1135, %v1140
        %v1143 = vunpack.c.l.s4 1934713408
        %v1144 = vunpack.c.0.s8 %v1143
        %v1145 = vperm.slane %v1137, %v1144
        %v1146 = vrot.slane %v1129, 4
        %v1147 = vsel %vm322, %v1146, %v1105
        %v1148 = vrot.slane %v1133, 4
        %v1149 = vsel %vm322, %v1148, %v1109
        %v1150 = vrot.slane %v1141, 4
        %v1151 = vsel %vm322, %v1150, %v1117
        %v1152 = vrot.slane %v1145, 4
        %v1153 = vsel %vm322, %v1152, %v1121
        %vm1154 = vcmask 517120
        %1155 = vst.msk [vmem:[%s136] sm:$0x3] %vm1154, 0.0
        %1156 = vst.msk [vmem:[%s136 + $0x6] sm:$0x3] %vm1154, 0.0
        %1189 = vset.pattern.permute.xlu0 0
        %1190 = vperm.xlu0 %1189, %v419
        %v1191 = vpop.permute.xlu0 %1190
        %1192 = vset.pattern.permute.xlu0 0
        %1193 = vperm.xlu0 %1192, %v421
        %v1194 = vpop.permute.xlu0 %1193
        %1195 = vset.pattern.permute.xlu0 0
        %1196 = vperm.xlu0 %1195, %v423
        %v1197 = vpop.permute.xlu0 %1196
        %1198 = vset.pattern.permute.xlu0 0
        %1199 = vperm.xlu0 %1198, %v425
        %v1200 = vpop.permute.xlu0 %1199
        %1201 = vset.pattern.permute.xlu0 0
        %1202 = vperm.xlu0 %1201, %v523
        %v1203 = vpop.permute.xlu0 %1202
        %1204 = vset.pattern.permute.xlu0 0
        %1205 = vperm.xlu0 %1204, %v525
        %v1206 = vpop.permute.xlu0 %1205
        %1207 = vset.pattern.permute.xlu0 0
        %1208 = vperm.xlu0 %1207, %v527
        %v1209 = vpop.permute.xlu0 %1208
        %1210 = vset.pattern.permute.xlu0 0
        %1211 = vperm.xlu0 %1210, %v529
        %v1212 = vpop.permute.xlu0 %1211
        %1213 = vset.pattern.permute.xlu0 0
        %1214 = vperm.xlu0 %1213, %v627
        %v1215 = vpop.permute.xlu0 %1214
        %1216 = vset.pattern.permute.xlu0 0
        %1217 = vperm.xlu0 %1216, %v629
        %v1218 = vpop.permute.xlu0 %1217
        %1219 = vset.pattern.permute.xlu0 0
        %1220 = vperm.xlu0 %1219, %v631
        %v1221 = vpop.permute.xlu0 %1220
        %1222 = vset.pattern.permute.xlu0 0
        %1223 = vperm.xlu0 %1222, %v633
        %v1224 = vpop.permute.xlu0 %1223
        %1225 = vset.pattern.permute.xlu0 0
        %1226 = vperm.xlu0 %1225, %v731
        %v1227 = vpop.permute.xlu0 %1226
        %1228 = vset.pattern.permute.xlu0 0
        %1229 = vperm.xlu0 %1228, %v733
        %v1230 = vpop.permute.xlu0 %1229
        %1231 = vset.pattern.permute.xlu0 0
        %1232 = vperm.xlu0 %1231, %v735
        %v1233 = vpop.permute.xlu0 %1232
        %1234 = vset.pattern.permute.xlu0 0
        %1235 = vperm.xlu0 %1234, %v737
        %v1236 = vpop.permute.xlu0 %1235
        %1237 = vset.pattern.permute.xlu0 0
        %1238 = vperm.xlu0 %1237, %v835
        %v1239 = vpop.permute.xlu0 %1238
        %1240 = vset.pattern.permute.xlu0 0
        %1241 = vperm.xlu0 %1240, %v837
        %v1242 = vpop.permute.xlu0 %1241
        %1243 = vset.pattern.permute.xlu0 0
        %1244 = vperm.xlu0 %1243, %v839
        %v1245 = vpop.permute.xlu0 %1244
        %1246 = vset.pattern.permute.xlu0 0
        %1247 = vperm.xlu0 %1246, %v841
        %v1248 = vpop.permute.xlu0 %1247
        %1249 = vset.pattern.permute.xlu0 0
        %1250 = vperm.xlu0 %1249, %v939
        %v1251 = vpop.permute.xlu0 %1250
        %1252 = vset.pattern.permute.xlu0 0
        %1253 = vperm.xlu0 %1252, %v941
        %v1254 = vpop.permute.xlu0 %1253
        %1255 = vset.pattern.permute.xlu0 0
        %1256 = vperm.xlu0 %1255, %v943
        %v1257 = vpop.permute.xlu0 %1256
        %1258 = vset.pattern.permute.xlu0 0
        %1259 = vperm.xlu0 %1258, %v945
        %v1260 = vpop.permute.xlu0 %1259
        %1261 = vset.pattern.permute.xlu0 0
        %1262 = vperm.xlu0 %1261, %v1043
        %v1263 = vpop.permute.xlu0 %1262
        %1264 = vset.pattern.permute.xlu0 0
        %1265 = vperm.xlu0 %1264, %v1045
        %v1266 = vpop.permute.xlu0 %1265
        %1267 = vset.pattern.permute.xlu0 0
        %1268 = vperm.xlu0 %1267, %v1047
        %v1269 = vpop.permute.xlu0 %1268
        %1270 = vset.pattern.permute.xlu0 0
        %1271 = vperm.xlu0 %1270, %v1049
        %v1272 = vpop.permute.xlu0 %1271
        %1273 = vset.pattern.permute.xlu0 0
        %1274 = vperm.xlu0 %1273, %v1147
        %v1275 = vpop.permute.xlu0 %1274
        %1276 = vset.pattern.permute.xlu0 0
        %1277 = vperm.xlu0 %1276, %v1149
        %v1278 = vpop.permute.xlu0 %1277
        %1279 = vset.pattern.permute.xlu0 0
        %1280 = vperm.xlu0 %1279, %v1151
        %v1281 = vpop.permute.xlu0 %1280
        %1282 = vset.pattern.permute.xlu0 0
        %1283 = vperm.xlu0 %1282, %v1153
        %v1284 = vpop.permute.xlu0 %1283
        %v1285 = vlaneseq
        %v1286 = vand.u32 %v1285, 127
        %v1287 = vperm.slane %v1191, %v1286
        %v1288 = vadd.s32 %v1286, 4294967288
        %v1289 = vperm.slane %v1194, %v1288
        %vm1290 = vcmask 130112
        %v1291 = vsel %vm1290, %v1289, %v1287
        %v1292 = vadd.s32 %v1286, 4294967280
        %v1293 = vperm.slane %v1197, %v1292
        %vm1294 = vcmask 195712
        %v1295 = vsel %vm1294, %v1293, %v1291
        %v1296 = vadd.s32 %v1286, 4294967272
        %v1297 = vperm.slane %v1200, %v1296
        %vm1298 = vcmask 261312
        %v1299 = vsel %vm1298, %v1297, %v1295
        %v1300 = vadd.s32 %v1286, 4294967264
        %v1301 = vperm.slane %v1203, %v1300
        %vm1302 = vcmask 326912
        %v1303 = vsel %vm1302, %v1301, %v1299
        %v1304 = vadd.s32 %v1286, 4294967256
        %v1305 = vperm.slane %v1206, %v1304
        %vm1306 = vcmask 392512
        %v1307 = vsel %vm1306, %v1305, %v1303
        %v1308 = vadd.s32 %v1286, 4294967248
        %v1309 = vperm.slane %v1209, %v1308
        %vm1310 = vcmask 458112
        %v1311 = vsel %vm1310, %v1309, %v1307
        %v1312 = vadd.s32 %v1286, 4294967240
        %v1313 = vperm.slane %v1212, %v1312
        %vm1314 = vcmask 523712
        %v1315 = vsel %vm1314, %v1313, %v1311
        %v1316 = vperm.slane %v1215, %v1286
        %v1317 = vperm.slane %v1218, %v1288
        %v1318 = vsel %vm1290, %v1317, %v1316
        %v1319 = vperm.slane %v1221, %v1292
        %v1320 = vsel %vm1294, %v1319, %v1318
        %v1321 = vperm.slane %v1224, %v1296
        %v1322 = vsel %vm1298, %v1321, %v1320
        %v1323 = vperm.slane %v1227, %v1300
        %v1324 = vsel %vm1302, %v1323, %v1322
        %v1325 = vperm.slane %v1230, %v1304
        %v1326 = vsel %vm1306, %v1325, %v1324
        %v1327 = vperm.slane %v1233, %v1308
        %v1328 = vsel %vm1310, %v1327, %v1326
        %v1329 = vperm.slane %v1236, %v1312
        %v1330 = vsel %vm1314, %v1329, %v1328
        %v1331 = vperm.slane %v1239, %v1286
        %v1332 = vperm.slane %v1242, %v1288
        %v1333 = vsel %vm1290, %v1332, %v1331
        %v1334 = vperm.slane %v1245, %v1292
        %v1335 = vsel %vm1294, %v1334, %v1333
        %v1336 = vperm.slane %v1248, %v1296
        %v1337 = vsel %vm1298, %v1336, %v1335
        %v1338 = vperm.slane %v1251, %v1300
        %v1339 = vsel %vm1302, %v1338, %v1337
        %v1340 = vperm.slane %v1254, %v1304
        %v1341 = vsel %vm1306, %v1340, %v1339
        %v1342 = vperm.slane %v1257, %v1308
        %v1343 = vsel %vm1310, %v1342, %v1341
        %v1344 = vperm.slane %v1260, %v1312
        %v1345 = vsel %vm1314, %v1344, %v1343
        %v1346 = vperm.slane %v1263, %v1286
        %v1347 = vperm.slane %v1266, %v1288
        %v1348 = vsel %vm1290, %v1347, %v1346
        %v1349 = vperm.slane %v1269, %v1292
        %v1350 = vsel %vm1294, %v1349, %v1348
        %v1351 = vperm.slane %v1272, %v1296
        %v1352 = vsel %vm1298, %v1351, %v1350
        %v1353 = vperm.slane %v1275, %v1300
        %v1354 = vsel %vm1302, %v1353, %v1352
        %v1355 = vperm.slane %v1278, %v1304
        %v1356 = vsel %vm1306, %v1355, %v1354
        %v1357 = vperm.slane %v1281, %v1308
        %v1358 = vsel %vm1310, %v1357, %v1356
        %v1359 = vperm.slane %v1284, %v1312
        %v1360 = vsel %vm1314, %v1359, %v1358
        %vm1361 = vcmask 1041409
        %v1362 = vsel %vm1361, %v1330, %v1315
        %vm1363 = vcmask 1042434
        %v1364 = vsel %vm1363, %v1345, %v1362
        %vm1365 = vcmask 1043459
        %v1366 = vsel %vm1365, %v1360, %v1364
        %vm1368 = vcmask 519168
        %1369 = vst.msk [vmem:[%s136 + $0x2] sm:$0xf] %vm1368, %v1366
        %s1370 = sand.u32 %s52, 1
        %s1371 = scalar_lea.sflag [#allocation4], %s1370
        %s1372 = sand.u32 %s52, 1
        %s1373 = smul.addr %s1372, 8
        %s1374 = scalar_lea.vmem [#allocation5], %s1373
        // Predicated region
        $region29: #{tpu_custom_call.1} parent=23 // pred_check
          %p1375 = pneg %p62
        $region30: #{tpu_custom_call.1} parent=23 // pred_check_branch
          %1377 = sbr.rel (%p1375) target = $region32
        $region31: #{tpu_custom_call.1} parent=23 // pred_region
          %1379 = vsyncadd %s1371, 0
          %s1380 = smul.addr %s18, 8
          %s1381 = scalar_lea.hbm %s1, %s1380
          %s1383 = sshll.u32 %s1374, 4
          %s1384 = int_to_ptr.vmem [resolvable:$true] %s1383
          %s1385 = sshll.u32 %s1381, 4
          %s1386 = int_to_ptr.hbm [resolvable:$true] %s1385
          %1388 = dma.vmem_to_hbm [thread:$0]  %s1384, 128, %s1386, %s1371
        $region32: #{tpu_custom_call.1} parent=23 // pred_fallthru
          _
      $region24: #{tpu_custom_call.1} parent=5 // pred_fallthru
        _
      %p1389 = scmp.le.s32.totalorder 2, %s13
      // Predicated region
      $region33: #{tpu_custom_call.1} parent=5 // pred_check
        %p1390 = pneg %p1389
      $region34: #{tpu_custom_call.1} parent=5 // pred_check_branch
        %1392 = sbr.rel (%p1390) target = $region36
      $region35: #{tpu_custom_call.1} parent=5 // pred_region
        %s1393 = ssub.s32 %s13, 2
        // Predicated region
        $region37: #{tpu_custom_call.1} parent=35 // pred_check
          %p1394 = pneg %p68
        $region38: #{tpu_custom_call.1} parent=35 // pred_check_branch
          %1396 = sbr.rel (%p1394) target = $region40
        $region39: #{tpu_custom_call.1} parent=35 // pred_region
          %s1397 = sand.u32 %s53, 1
          %s1398 = scalar_lea.sflag [#allocation4], %s1397
          %s1399 = sand.u32 %s53, 1
          %s1400 = smul.addr %s1399, 8
          %s1401 = scalar_lea.vmem [#allocation5], %s1400
          %1403 = dma.done %s1398, 128
        $region40: #{tpu_custom_call.1} parent=35 // pred_fallthru
          _
      $region36: #{tpu_custom_call.1} parent=5 // pred_fallthru
        _
    $region6: #{tpu_custom_call.1} parent=1 // loop_footer
      %s17 = sadd.s32 1, %s13
    $region7: #{tpu_custom_call.1} parent=1 // loop_footer_branch
      %12 = sbr.rel target = $region3
    $region8: #{tpu_custom_call.1} parent=1 // loop_exit
      _
    %1404 = vsyncpa [#allocation3], 1
    %s1405 = scalar_lea.sflag [#allocation3], 1
    %1406 = vsyncpa %s1405, 1
    %1407 = vsyncpa [#allocation4], 1
    %s1408 = scalar_lea.sflag [#allocation4], 1
    %1409 = vsyncpa %s1408, 1

</llo_original>
